<compile_context>
chip_gen: v6e
topology: v6e:2x2x1
jax: 0.10.0
libtpu: 0.0.40
codegen_flags: <defaults>
</compile_context>

<pallas_src>
import functools

import jax
import jax.numpy as jnp
from jax import lax
from jax.experimental import pallas as pl
from jax.experimental.pallas import tpu as pltpu

_LANE = 128


def _bce_and_mask(logits_ref, targets_ref, mask_ref, *, n_valid):
    """Stable BCE-with-logits per (threshold, position) + combined validity mask.

    logits_ref : (Km1, T) bf16/f32 cumulative logits (thresholds on sublanes)
    targets_ref: (1, T)   int32 categorical targets
    mask_ref   : (1, T)   f32 user mask, or None
    returns    : bce (Km1, T) f32, mask (1, T) f32 (zero on padded tail lanes)
    """
    x = logits_ref[...].astype(jnp.float32)
    k_idx = lax.broadcasted_iota(jnp.int32, x.shape, 0)          # threshold index
    z = (targets_ref[...] > k_idx).astype(jnp.float32)           # cumulative labels
    # numerically-stable BCE with logits: max(x,0) - x*z + log1p(exp(-|x|))
    bce = (jnp.maximum(x, 0.0) - x * z
           + jnp.log1p(jnp.exp(-jnp.abs(x))))
    t = targets_ref.shape[-1]
    pos = (pl.program_id(0) * t
           + lax.broadcasted_iota(jnp.int32, (1, t), 1))
    m = (pos < n_valid).astype(jnp.float32)                      # ragged-tail validity
    if mask_ref is not None:
        m = m * mask_ref[...]
    return bce, m


def _coral_sums_kernel(*refs, inv_km1, n_valid, has_mask):
    """Per-tile partial sums: row 0 = sum(masked loss), row 1 = sum(mask)."""
    if has_mask:
        logits_ref, targets_ref, mask_ref, sums_ref = refs
    else:
        logits_ref, targets_ref, sums_ref = refs
        mask_ref = None
    bce, m = _bce_and_mask(logits_ref, targets_ref, mask_ref, n_valid=n_valid)
    loss_sum = jnp.sum(bce * m) * inv_km1
    mask_sum = jnp.sum(m)
    sums_ref[...] = jnp.concatenate(
        [jnp.full((1, _LANE), loss_sum, dtype=jnp.float32),
         jnp.full((1, _LANE), mask_sum, dtype=jnp.float32)], axis=0)[None]


def _coral_vec_kernel(*refs, inv_km1, n_valid, has_mask):
    """Per-position masked loss, lane-dense (1, T)."""
    if has_mask:
        logits_ref, targets_ref, mask_ref, loss_ref = refs
    else:
        logits_ref, targets_ref, loss_ref = refs
        mask_ref = None
    bce, m = _bce_and_mask(logits_ref, targets_ref, mask_ref, n_valid=n_valid)
    per_pos = jnp.sum(bce, axis=0, keepdims=True)                 # (1, T)
    loss_ref[...] = per_pos * (m * inv_km1)


def _choose_tiling(n, tile_n_max):
    """Pick (tile_n, num_tiles, n_pad): lane-aligned, balanced tiles,
    >= 2 tiles when there is enough work (v7x dual-TC), padding <= 1 lane-tile."""
    n128 = pl.cdiv(max(n, 1), _LANE) * _LANE
    tile_n_max = max(_LANE, (int(tile_n_max) // _LANE) * _LANE)
    if n128 >= 2 * _LANE:                       # enough work to split across TCs
        tile_n_max = min(tile_n_max, pl.cdiv(pl.cdiv(n128, 2), _LANE) * _LANE)
    num_tiles = pl.cdiv(n128, tile_n_max)
    tile_n = pl.cdiv(pl.cdiv(n128, num_tiles), _LANE) * _LANE
    return tile_n, num_tiles, num_tiles * tile_n


def _vmem_limit_bytes(tile_n, km1, has_mask, need_vec_out):
    """Conservative double-buffered VMEM estimate (sublane-padded blocks)."""
    per_lane = pl.cdiv(km1, 8) * 8 * 4          # logits block (covers bf16/f32)
    per_lane += 8 * 4                           # targets row, padded to 8 sublanes
    if has_mask:
        per_lane += 8 * 4
    if need_vec_out:
        per_lane += 8 * 4
    need = 2 * per_lane * tile_n + (2 << 20)
    return int(min(max(need, 8 << 20), 96 << 20))


def coral_compatible_loss(logits, targets, mask=None, *, n_cats,
                          reduction="mean", tile_n=128 * 1024,
                          kernel_logits_dtype=jnp.bfloat16):
    """JAX/Pallas equivalent of CORALCompatibleLoss.forward.

    logits : (B, S, n_cats-1) -- info['logits'] from the CORAL layer
    targets: (B, S) integer categories
    mask   : (B, S) float validity mask, or None

    Call under jax.jit so the cast/transpose/pad layout pre-pass fuses into a
    single XLA copy feeding the kernel.
    """
    B, S = targets.shape
    Km1 = n_cats - 1
    N = B * S
    tile, num_tiles, n_pad = _choose_tiling(N, tile_n)
    pad = n_pad - N

    # Threshold-major (Km1, N_pad), narrow dtype into the kernel.
    # TODO(synk): emit (Km1, N) bf16 straight out of the CORAL layer's matmul.
    logits_t = jnp.pad(
        logits.reshape(N, Km1).astype(kernel_logits_dtype).T, ((0, 0), (0, pad)))
    targets_row = jnp.pad(
        targets.reshape(1, N).astype(jnp.int32), ((0, 0), (0, pad)))

    inputs = [logits_t, targets_row]
    in_specs = [pl.BlockSpec((Km1, tile), lambda i: (0, i)),
                pl.BlockSpec((1, tile), lambda i: (0, i))]
    has_mask = mask is not None
    if has_mask:
        inputs.append(jnp.pad(mask.reshape(1, N).astype(jnp.float32),
                              ((0, 0), (0, pad))))
        in_specs.append(pl.BlockSpec((1, tile), lambda i: (0, i)))

    inv_km1 = 1.0 / float(Km1)
    need_vec = reduction not in ("mean", "sum")
    cparams = pltpu.CompilerParams(
        dimension_semantics=("parallel",),
        vmem_limit_bytes=_vmem_limit_bytes(tile, Km1, has_mask, need_vec))

    if not need_vec:
        # Only per-tile partial sums ever hit HBM on the output side.
        sums = pl.pallas_call(
            functools.partial(_coral_sums_kernel, inv_km1=inv_km1,
                              n_valid=N, has_mask=has_mask),
            out_shape=jax.ShapeDtypeStruct((num_tiles, 2, _LANE), jnp.float32),
            grid=(num_tiles,),
            in_specs=in_specs,
            out_specs=pl.BlockSpec((1, 2, _LANE), lambda i: (i, 0, 0)),
            compiler_params=cparams,
        )(*inputs)
        loss_sum = jnp.sum(sums[:, 0, 0])
        if reduction == "sum":
            return loss_sum
        if has_mask:
            return loss_sum / (jnp.sum(sums[:, 1, 0]) + 1e-07)
        return loss_sum / jnp.float32(N)

    # reduction == "none": lane-dense per-position (masked) loss of shape (N,)
    loss_row = pl.pallas_call(
        functools.partial(_coral_vec_kernel, inv_km1=inv_km1,
                          n_valid=N, has_mask=has_mask),
        out_shape=jax.ShapeDtypeStruct((1, n_pad), jnp.float32),
        grid=(num_tiles,),
        in_specs=in_specs,
        out_specs=pl.BlockSpec((1, tile), lambda i: (0, i)),
        compiler_params=cparams,
    )(*inputs)
    return loss_row[0, :N]


def _reference_loss(logits, targets, mask, n_cats, reduction):
    """Pure-JAX reference mirroring the PyTorch module."""
    Km1 = n_cats - 1
    k_idx = jnp.arange(Km1)
    cum_t = (targets[..., None] > k_idx).astype(jnp.float32)      # (B,S,K-1)
    x = logits.astype(jnp.float32)
    bce = jnp.maximum(x, 0.0) - x * cum_t + jnp.log1p(jnp.exp(-jnp.abs(x)))
    loss = bce.reshape(-1, Km1).mean(axis=-1)
    if mask is not None:
        m = mask.reshape(-1).astype(jnp.float32)
        loss = loss * m
        if reduction == "mean":
            return loss.sum() / (m.sum() + 1e-07)
        elif reduction == "sum":
            return loss.sum()
    elif reduction == "mean":
        return loss.mean()
    elif reduction == "sum":
        return loss.sum()
    return loss


if __name__ == "__main__":
    key = jax.random.PRNGKey(0)
    n_cats = 5
    Km1 = n_cats - 1

    ok = True
    # (B, S, tile_n): small, ragged (N not a multiple of 128), multi-tile grids.
    for (B, S), tile_n in (((2, 8), 8192), ((3, 50), 8192), ((4, 512), 512)):
        key, k1, k2, k3 = jax.random.split(key, 4)
        # The kernel reads logits as bf16; make test inputs exactly
        # bf16-representable so the f32 reference matches to tight tolerance.
        logits = jax.random.normal(k1, (B, S, Km1), dtype=jnp.float32)
        logits = logits.astype(jnp.bfloat16).astype(jnp.float32)
        targets = jax.random.randint(k2, (B, S), 0, n_cats, dtype=jnp.int32)
        mask = (jax.random.uniform(k3, (B, S)) > 0.3).astype(jnp.float32)

        for reduction in ("mean", "sum", "none"):
            fn = jax.jit(functools.partial(
                coral_compatible_loss, n_cats=n_cats, reduction=reduction,
                tile_n=tile_n))
            for m in (mask, None):
                out = jax.block_until_ready(fn(logits, targets, m))
                ref = _reference_loss(logits, targets, m, n_cats, reduction)
                if not bool(jnp.allclose(out, ref, atol=1e-5, rtol=1e-5)):
                    ok = False

    print("KERNEL_OK" if ok else "KERNEL_MISMATCH")
</pallas_src>

<mosaic_0001>
module attributes {stable_mosaic.version = 11 : i64} {
  func.func @_coral_sums_kernel(%arg0: i32, %arg1: memref<4x128xbf16, #tpu.memory_space<vmem>>, %arg2: memref<1x128xi32, #tpu.memory_space<vmem>>, %arg3: memref<1x128xf32, #tpu.memory_space<vmem>>, %arg4: memref<1x2x128xf32, #tpu.memory_space<vmem>>) attributes {dimension_semantics = [#tpu.dimension_semantics<parallel>], iteration_bounds = array<i64: 1>, scalar_prefetch = 0 : i64, scratch_operands = 0 : i64, tpu.core_type = #tpu.core_type<tc>, window_params = [{transform_indices = @transform_0, window_bounds = array<i64: 4, 128>}, {transform_indices = @transform_1, window_bounds = array<i64: 1, 128>}, {transform_indices = @transform_2, window_bounds = array<i64: 1, 128>}, {transform_indices = @transform_3, window_bounds = array<i64: 1, 2, 128>}]} {
    %c0 = arith.constant 0 : index
    %c0_0 = arith.constant 0 : index
    %0 = vector.load %arg1[%c0, %c0_0] : memref<4x128xbf16, #tpu.memory_space<vmem>>, vector<4x128xbf16>
    %1 = arith.extf %0 : vector<4x128xbf16> to vector<4x128xf32>
    %2 = tpu.iota {dimensions = array<i32: 0>} : vector<4x128xi32>
    %c0_1 = arith.constant 0 : index
    %c0_2 = arith.constant 0 : index
    %3 = vector.load %arg2[%c0_1, %c0_2] : memref<1x128xi32, #tpu.memory_space<vmem>>, vector<1x128xi32>
    %4 = vector.broadcast %3 : vector<1x128xi32> to vector<4x128xi32>
    %5 = arith.cmpi sgt, %4, %2 : vector<4x128xi32>
    %6 = arith.extui %5 : vector<4x128xi1> to vector<4x128xi32>
    %7 = arith.sitofp %6 : vector<4x128xi32> to vector<4x128xf32>
    %cst = arith.constant 0.000000e+00 : f32
    %8 = vector.broadcast %cst : f32 to vector<4x128xf32>
    %9 = arith.maximumf %1, %8 : vector<4x128xf32>
    %10 = arith.mulf %1, %7 : vector<4x128xf32>
    %11 = arith.subf %9, %10 : vector<4x128xf32>
    %12 = math.absf %1 : vector<4x128xf32>
    %cst_3 = arith.constant 0.000000e+00 : f32
    %13 = vector.broadcast %cst_3 : f32 to vector<4x128xf32>
    %14 = arith.subf %13, %12 : vector<4x128xf32>
    %15 = math.exp %14 : vector<4x128xf32>
    %16 = math.log1p %15 : vector<4x128xf32>
    %17 = arith.addf %11, %16 : vector<4x128xf32>
    %c128_i32 = arith.constant 128 : i32
    %18 = arith.muli %arg0, %c128_i32 : i32
    %19 = tpu.iota {dimensions = array<i32: 1>} : vector<1x128xi32>
    %20 = vector.broadcast %18 : i32 to vector<1x128xi32>
    %21 = arith.addi %20, %19 : vector<1x128xi32>
    %c16_i32 = arith.constant 16 : i32
    %22 = vector.broadcast %c16_i32 : i32 to vector<1x128xi32>
    %23 = arith.cmpi slt, %21, %22 : vector<1x128xi32>
    %24 = arith.extui %23 : vector<1x128xi1> to vector<1x128xi32>
    %25 = arith.sitofp %24 : vector<1x128xi32> to vector<1x128xf32>
    %c0_4 = arith.constant 0 : index
    %c0_5 = arith.constant 0 : index
    %26 = vector.load %arg3[%c0_4, %c0_5] : memref<1x128xf32, #tpu.memory_space<vmem>>, vector<1x128xf32>
    %27 = arith.mulf %25, %26 : vector<1x128xf32>
    %28 = vector.broadcast %27 : vector<1x128xf32> to vector<4x128xf32>
    %29 = arith.mulf %17, %28 : vector<4x128xf32>
    %30 = vector.shape_cast %29 : vector<4x128xf32> to vector<1x4x128xf32>
    %cst_6 = arith.constant dense<0.000000e+00> : vector<1xf32>
    %31 = vector.multi_reduction <add>, %30, %cst_6 [1, 2] : vector<1x4x128xf32> to vector<1xf32>
    %32 = vector.shape_cast %31 : vector<1xf32> to vector<1x1x1xf32>
    %33 = vector.extract %32[0, 0, 0] : f32 from vector<1x1x1xf32>
    %cst_7 = arith.constant 2.500000e-01 : f32
    %34 = arith.mulf %33, %cst_7 : f32
    %35 = vector.shape_cast %27 : vector<1x128xf32> to vector<1x1x128xf32>
    %cst_8 = arith.constant dense<0.000000e+00> : vector<1xf32>
    %36 = vector.multi_reduction <add>, %35, %cst_8 [1, 2] : vector<1x1x128xf32> to vector<1xf32>
    %37 = vector.shape_cast %36 : vector<1xf32> to vector<1x1x1xf32>
    %38 = vector.extract %37[0, 0, 0] : f32 from vector<1x1x1xf32>
    %39 = vector.broadcast %34 : f32 to vector<1x128xf32>
    %40 = vector.broadcast %38 : f32 to vector<1x128xf32>
    %41 = tpu.concatenate %39, %40 in 0 : vector<1x128xf32>, vector<1x128xf32> -> vector<2x128xf32>
    %42 = vector.shape_cast %41 : vector<2x128xf32> to vector<1x2x128xf32>
    %c0_9 = arith.constant 0 : index
    %c0_10 = arith.constant 0 : index
    %c0_11 = arith.constant 0 : index
    %43 = vector.load %arg4[%c0_9, %c0_10, %c0_11] : memref<1x2x128xf32, #tpu.memory_space<vmem>>, vector<1x2x128xf32>
    tpu.vector_store %arg4[%c0_9, %c0_10, %c0_11], %42 {strides = array<i32>} : memref<1x2x128xf32, #tpu.memory_space<vmem>>, vector<1x2x128xf32>,
    return
  }
  func.func @transform_0(%arg0: i32) -> (i32, i32) {
    %c0_i32 = arith.constant 0 : i32
    %c0_i32_0 = arith.constant 0 : i32
    return %c0_i32, %arg0 : i32, i32
  }
  func.func @transform_1(%arg0: i32) -> (i32, i32) {
    %c0_i32 = arith.constant 0 : i32
    %c0_i32_0 = arith.constant 0 : i32
    return %c0_i32, %arg0 : i32, i32
  }
  func.func @transform_2(%arg0: i32) -> (i32, i32) {
    %c0_i32 = arith.constant 0 : i32
    %c0_i32_0 = arith.constant 0 : i32
    return %c0_i32, %arg0 : i32, i32
  }
  func.func @transform_3(%arg0: i32) -> (i32, i32, i32) {
    %c0_i32 = arith.constant 0 : i32
    %c0_i32_0 = arith.constant 0 : i32
    %c0_i32_1 = arith.constant 0 : i32
    return %arg0, %c0_i32, %c0_i32_0 : i32, i32, i32
  }
}

</mosaic_0001>

<llo_original>
// kernel: coral_compatible_loss.1
$region0: #{coral_compatible_loss.1}
  #allocation0 [shape = 'u32[]', space=smem, size = 0x4, offset = 0x4, fixed_abs, tag = 'smem constant byte address 0x4 - core index']
  #allocation1 [shape = 'u32[144,128]{1,0:T(1,128)}', space=vmem, size = 0x12000, scoped, tag = 'internal scratch']
  %s0 = inlined_call_operand.vmem [shape: bf16[4,128], index: 0, kind: input, shape index: {}]
  %s1 = inlined_call_operand.vmem [shape: s32[1,128], index: 1, kind: input, shape index: {}]
  %s2 = inlined_call_operand.vmem [shape: f32[1,128], index: 2, kind: input, shape index: {}]
  %s3 = inlined_call_operand.vmem [shape: f32[1,2,128], index: 3, kind: output, shape index: {}]
  %s4 = sld [smem:[#allocation0]]
  $region22: #{coral_compatible_loss.1} parent=0
    _
  %s6 = ssub.s32 1, %s4
  %s7 = scalar_select 0, %s6, %s4
  // Predicated region
  $region2: #{coral_compatible_loss.1} parent=0 // pred_check
    _
  $region3: #{coral_compatible_loss.1} parent=0 // pred_check_branch
    %9 = sbr.rel (0) target = $region5
  $region4: #{coral_compatible_loss.1} parent=0 // pred_region
    _
  $region5: #{coral_compatible_loss.1} parent=0 // pred_fallthru
    _
  // Predicated region
  $region6: #{coral_compatible_loss.1} parent=0 // pred_check
    _
  $region7: #{coral_compatible_loss.1} parent=0 // pred_check_branch
    %11 = sbr.rel (0) target = $region9
  $region8: #{coral_compatible_loss.1} parent=0 // pred_region
    _
  $region9: #{coral_compatible_loss.1} parent=0 // pred_fallthru
    _
  // Predicated region
  $region10: #{coral_compatible_loss.1} parent=0 // pred_check
    _
  $region11: #{coral_compatible_loss.1} parent=0 // pred_check_branch
    %13 = sbr.rel (0) target = $region13
  $region12: #{coral_compatible_loss.1} parent=0 // pred_region
    _
  $region13: #{coral_compatible_loss.1} parent=0 // pred_fallthru
    _
  %v14 = vld [vmem:[%s0] sm:$0x3]
  %v15 = vunpack.c.l.bf16 %v14
  %v16 = vlaneseq
  %v17 = vshrl.u32 %v16, 7
  %v18 = vld [vmem:[%s1] sm:$0x1]
  %v19 = vlaneseq
  %v20 = vshrl.u32 %v19, 7
  %v21 = vsub.s32 0, %v20
  %v22 = vrot.slane %v18, %v21
  %vm23 = vcmp.gt.s32.totalorder %v22, %v17
  %v24 = vsel %vm23, 1, 0
  %v25 = vcvt.s32.f32 %v24
  %v26 = vmax.f32 %v15, 0.0
  %v27 = vmul.f32 %v15, %v25
  %v28 = vsub.f32 %v26, %v27
  %v29 = vand.u32 2147483647, %v15
  %v30 = vsub.f32 0.0, %v29
  %v31 = vmul.f32 %v30, 1.442695
  %v32 = vpow.pop %v31
  %v33 = vadd.f32 %v32, 1.0
  %v34 = vlog2.pop %v33
  %v35 = vmul.f32 %v34, 0.6931472
  %v36 = vmul.f32 -0.5, %v32
  %v37 = vadd.f32 %v36, 1.0
  %v38 = vmul.f32 %v37, %v32
  %v39 = vand.u32 2147483647, %v32
  %vm40 = vcmp.lt.f32.partialorder %v39, 0.0004427343
  %v41 = vsel %vm40, %v38, %v35
  %v42 = vadd.f32 %v28, %v41
  %s43 = smul.u32 0, 128
  %v44 = vlaneseq
  %v45 = vand.u32 %v44, 127
  %v46 = vstv %s43
  %v47 = vadd.s32 %v46, %v45
  %vm48 = vcmp.lt.s32.totalorder %v47, 16
  %v49 = vsel %vm48, 1, 0
  %v50 = vcvt.s32.f32 %v49
  %v51 = vld [vmem:[%s2] sm:$0x1]
  %v52 = vmul.f32 %v50, %v51
  %v53 = vlaneseq
  %v54 = vshrl.u32 %v53, 7
  %v55 = vsub.s32 0, %v54
  %v56 = vrot.slane %v52, %v55
  %v57 = vmul.f32 %v42, %v56
  %vm58 = vcmask 1043456
  %v59 = vsel %vm58, %v57, 0.0
  %60 = vadd.xlane.f32.xlu0 %v59
  %v61 = vpop.xlane.xlu0 %60
  %v62 = vrot.slane %v61, 4
  %v63 = vadd.f32 %v61, %v62
  %v64 = vrot.slane %v63, 2
  %v65 = vadd.f32 %v63, %v64
  %v66 = vrot.slane %v65, 1
  %v67 = vadd.f32 %v65, %v66
  %s68 = vtos %v67
  %s69 = smul.f32 %s68, 0.25
  %vm70 = vcmask 1040384
  %v71 = vsel %vm70, %v52, 0.0
  %72 = vadd.xlane.f32.xlu0 %v71
  %v73 = vpop.xlane.xlu0 %72
  %v74 = vrot.slane %v73, 4
  %v75 = vadd.f32 %v73, %v74
  %v76 = vrot.slane %v75, 2
  %v77 = vadd.f32 %v75, %v76
  %v78 = vrot.slane %v77, 1
  %v79 = vadd.f32 %v77, %v78
  %s80 = vtos %v79
  %v81 = vstv %s69
  %v82 = vstv %s80
  %v83 = vsel %vm70, %v81, %v82
  %84 = vst [vmem:[%s3] sm:$0x3] %v83
  // Predicated region
  $region14: #{coral_compatible_loss.1} parent=0 // pred_check
    _
  $region15: #{coral_compatible_loss.1} parent=0 // pred_check_branch
    %86 = sbr.rel (0) target = $region17
  $region16: #{coral_compatible_loss.1} parent=0 // pred_region
    _
  $region17: #{coral_compatible_loss.1} parent=0 // pred_fallthru
    _
  // Predicated region
  $region18: #{coral_compatible_loss.1} parent=0 // pred_check
    _
  $region19: #{coral_compatible_loss.1} parent=0 // pred_check_branch
    %88 = sbr.rel (0) target = $region21
  $region20: #{coral_compatible_loss.1} parent=0 // pred_region
    _
  $region21: #{coral_compatible_loss.1} parent=0 // pred_fallthru
    _

</llo_original>
